<compile_context>
chip_gen: v7x
topology: tpu7x:2x2x1
jax: 0.10.0
libtpu: 0.0.40
codegen_flags: <defaults>
</compile_context>

<pallas_src>
import functools

import jax
import jax.numpy as jnp
from jax.experimental import pallas as pl
from jax.experimental.pallas import tpu as pltpu


def _sigmoid_shift_kernel(shift_ref, x_ref, o_ref, *, compute_dtype):
    # shift_ref: (1,1) scalar in SMEM; x_ref/o_ref: (block_rows, lanes) VMEM tiles.
    shift = shift_ref[0, 0].astype(compute_dtype)
    z = x_ref[...].astype(compute_dtype) - shift
    # sigmoid(z) = 1 / (1 + exp(-z)); exp goes to the EUP, divide is exact.
    o_ref[...] = (1.0 / (1.0 + jnp.exp(-z))).astype(o_ref.dtype)


def sigmoid_shift(x: jax.Array, shift,
                  *, target_block_bytes: int = 4 * 1024 * 1024,
                  donate_x: bool = False) -> jax.Array:
    """Pallas TPU implementation of SigmoidShift.forward (elementwise, mem-bound)."""
    orig_shape = x.shape
    in_dtype = x.dtype
    floating_in = jnp.issubdtype(in_dtype, jnp.floating)
    out_dtype = in_dtype if floating_in else jnp.float32
    compute_dtype = in_dtype if in_dtype in (jnp.bfloat16, jnp.float32) else jnp.float32

    n = int(x.size)
    if n == 0:
        return x.astype(out_dtype)

    # shift as a runtime SMEM scalar (no recompile per value; works when traced).
    shift_arr = jnp.asarray(shift, dtype=jnp.float32).reshape(1, 1)

    # ---- Lane-dense 2-D layout, zero-copy whenever x.size % 128 == 0 ----------
    lanes = next((w for w in (1024, 512, 256, 128) if n % w == 0), 128)
    pad = (-n) % lanes                       # at most 127 elements; usually 0
    flat = x.reshape(-1)
    if pad:
        flat = jnp.pad(flat, (0, pad))       # rare; fused into the call if possible
    rows = (n + pad) // lanes
    x2d = flat.reshape(rows, lanes)

    itemsize = jnp.dtype(in_dtype).itemsize
    out_itemsize = jnp.dtype(out_dtype).itemsize
    block_rows = max(8, (target_block_bytes // (lanes * max(itemsize, 1))) // 8 * 8)

    if rows <= block_rows:
        br = rows                            # single full-array block (exempt from 8x128 rule)
        grid = (1,)
    else:
        br = block_rows                      # multiple of 8; ragged tail masked by Pallas
        grid = (pl.cdiv(rows, br),)

    total = rows * lanes
    cost = pl.CostEstimate(
        flops=5 * total,                     # subtract + sigmoid arithmetic
        transcendentals=total,               # one exp per element
        bytes_accessed=total * (itemsize + out_itemsize),
    )

    compiler_params = pltpu.CompilerParams(
        dimension_semantics=("parallel",),            # v7x: shard row-blocks across both TCs
        vmem_limit_bytes=48 * 1024 * 1024,            # safe on v5e/v6e/v7x for ~16 MiB resident
        allow_input_fusion=[False, True] if pad else None,
    )

    io_alias = {}
    if donate_x and pad == 0 and out_dtype == in_dtype:
        io_alias = {1: 0}                    # alias x2d -> output when caller donates x

    out2d = pl.pallas_call(
        functools.partial(_sigmoid_shift_kernel, compute_dtype=compute_dtype),
        out_shape=jax.ShapeDtypeStruct((rows, lanes), out_dtype),
        grid_spec=pl.GridSpec(
            grid=grid,
            in_specs=[
                pl.BlockSpec(memory_space=pltpu.MemorySpace.SMEM),   # shift scalar
                pl.BlockSpec((br, lanes), lambda i: (i, 0)),         # x tile
            ],
            out_specs=pl.BlockSpec((br, lanes), lambda i: (i, 0)),
        ),
        compiler_params=compiler_params,
        cost_estimate=cost,
        input_output_aliases=io_alias,
    )(shift_arr, x2d)

    if pad:
        return out2d.reshape(-1)[:n].reshape(orig_shape)
    return out2d.reshape(orig_shape)


if __name__ == "__main__":
    key = jax.random.PRNGKey(0)
    # Activation-style tensor: batch=2, channels=4, 16x16 spatial.
    x = jax.random.normal(key, (2, 4, 16, 16), dtype=jnp.float32)
    shift = 0.5  # construction-time parameter from SigmoidShift.__init__

    out = jax.block_until_ready(sigmoid_shift(x, shift))

    # Reference: same math as torch.sigmoid(x - shift).
    ref = jax.nn.sigmoid(x - shift)
    assert out.shape == x.shape and out.dtype == x.dtype
    assert float(jnp.max(jnp.abs(out - ref))) < 1e-5

    print("KERNEL_OK")
</pallas_src>

<mosaic_0001>
module attributes {stable_mosaic.version = 11 : i64} {
  func.func @_sigmoid_shift_kernel(%arg0: i32, %arg1: memref<1x1xf32, #tpu.memory_space<smem>>, %arg2: memref<2x1024xf32, #tpu.memory_space<vmem>>, %arg3: memref<2x1024xf32, #tpu.memory_space<vmem>>) attributes {dimension_semantics = [#tpu.dimension_semantics<parallel>], iteration_bounds = array<i64: 1>, scalar_prefetch = 0 : i64, scratch_operands = 0 : i64, tpu.core_type = #tpu.core_type<tc>, window_params = [{transform_indices = @transform_0, window_bounds = array<i64: 1, 1>}, {transform_indices = @transform_1, window_bounds = array<i64: 2, 1024>}, {transform_indices = @transform_2, window_bounds = array<i64: 2, 1024>}]} {
    %c0 = arith.constant 0 : index
    %c0_0 = arith.constant 0 : index
    %0 = memref.load %arg1[%c0, %c0_0] : memref<1x1xf32, #tpu.memory_space<smem>>
    %c0_1 = arith.constant 0 : index
    %c0_2 = arith.constant 0 : index
    %1 = vector.load %arg2[%c0_1, %c0_2] : memref<2x1024xf32, #tpu.memory_space<vmem>>, vector<2x1024xf32>
    %2 = vector.broadcast %0 : f32 to vector<2x1024xf32>
    %3 = arith.subf %1, %2 : vector<2x1024xf32>
    %cst = arith.constant 0.000000e+00 : f32
    %4 = vector.broadcast %cst : f32 to vector<2x1024xf32>
    %5 = arith.subf %4, %3 : vector<2x1024xf32>
    %6 = math.exp %5 : vector<2x1024xf32>
    %cst_3 = arith.constant 1.000000e+00 : f32
    %7 = vector.broadcast %cst_3 : f32 to vector<2x1024xf32>
    %8 = arith.addf %7, %6 : vector<2x1024xf32>
    %cst_4 = arith.constant 1.000000e+00 : f32
    %9 = vector.broadcast %cst_4 : f32 to vector<2x1024xf32>
    %10 = arith.divf %9, %8 : vector<2x1024xf32>
    %c0_5 = arith.constant 0 : index
    %c0_6 = arith.constant 0 : index
    %11 = vector.load %arg3[%c0_5, %c0_6] : memref<2x1024xf32, #tpu.memory_space<vmem>>, vector<2x1024xf32>
    tpu.vector_store %arg3[%c0_5, %c0_6], %10 {strides = array<i32>} : memref<2x1024xf32, #tpu.memory_space<vmem>>, vector<2x1024xf32>,
    return
  }
  func.func @transform_0(%arg0: i32) -> (i32, i32) {
    %c0_i32 = arith.constant 0 : i32
    %c0_i32_0 = arith.constant 0 : i32
    %c0_i32_1 = arith.constant 0 : i32
    return %c0_i32, %c0_i32_0 : i32, i32
  }
  func.func @transform_1(%arg0: i32) -> (i32, i32) {
    %c0_i32 = arith.constant 0 : i32
    %c0_i32_0 = arith.constant 0 : i32
    return %arg0, %c0_i32 : i32, i32
  }
  func.func @transform_2(%arg0: i32) -> (i32, i32) {
    %c0_i32 = arith.constant 0 : i32
    %c0_i32_0 = arith.constant 0 : i32
    return %arg0, %c0_i32 : i32, i32
  }
}

</mosaic_0001>

<llo_original>
// kernel: tpu_custom_call.1
$region0: #{tpu_custom_call.1}
  #allocation0 [shape = 'u32[]', space=smem, size = 0x4, offset = 0x4, fixed_abs, tag = 'smem constant byte address 0x4 - core index']
  #allocation1 [shape = 'u32[144,128]{1,0:T(1,128)}', space=vmem, size = 0x12000, scoped, tag = 'internal scratch']
  #allocation2 [shape = 'f32[1,1]{1,0:T(1,128)S(6)}', space=smem, size = 0x200, scoped, tag = 'scoped memory for tpu_custom_call.1']
  %s0 = inlined_call_operand.<no memory space> [shape: f32[1,1], index: 0, kind: input, shape index: {}]
  %s1 = inlined_call_operand.hbm [shape: f32[2,1024], index: 1, kind: input, shape index: {}]
  %s2 = inlined_call_operand.hbm [shape: f32[2,1024], index: 2, kind: output, shape index: {}]
  %s3 = sld [smem:[#allocation0]]
  $region22: #{tpu_custom_call.1} parent=0
    _
  %s5 = ssub.s32 1, %s3
  %s6 = scalar_select 0, %s5, %s3
  %7 = sst [smem:[#allocation2]] %s0
  $region1: #{tpu_custom_call.1} parent=0
    #allocation3 [shape = 'u8[8192]{0}', space=vmem, size = 0x2000, scoped, tag = 'input window, operand 1, single buffered']
    #allocation4 [shape = 's32[1]{0}', space=sflag, size = 0x4, scoped, tag = 'scoped memory for tpu_custom_call.1']
    #allocation5 [shape = 's32[1]{0}', space=sflag, size = 0x4, scoped, tag = 'scoped memory for tpu_custom_call.1']
    #allocation6 [shape = 'u8[8192]{0}', space=vmem, size = 0x2000, scoped, tag = 'output window, operand 0, single buffered']
    %8 = vsyncpa [#allocation4], 0
    %9 = vsyncpa [#allocation5], 0
    // Predicated region
    $region2: #{tpu_custom_call.1} parent=1 // pred_check
      _
    $region3: #{tpu_custom_call.1} parent=1 // pred_check_branch
      %11 = sbr.rel (0) target = $region5
    $region4: #{tpu_custom_call.1} parent=1 // pred_region
      _
    $region5: #{tpu_custom_call.1} parent=1 // pred_fallthru
      _
    // Predicated region
    $region6: #{tpu_custom_call.1} parent=1 // pred_check
      _
    $region7: #{tpu_custom_call.1} parent=1 // pred_check_branch
      %13 = sbr.rel (0) target = $region9
    $region8: #{tpu_custom_call.1} parent=1 // pred_region
      %s15 = ssub.s32 256, 256
      %16 = vsyncadd [#allocation4], %s15
      %s18 = sshll.u32 [#allocation3], 4
      %s19 = int_to_ptr.vmem [resolvable:$true] %s18
      %21 = dma.hbm_to_vmem [thread:$0]  %s1, 256, %s19, [#allocation4]
    $region9: #{tpu_custom_call.1} parent=1 // pred_fallthru
      _
    // Predicated region
    $region10: #{tpu_custom_call.1} parent=1 // pred_check
      _
    $region11: #{tpu_custom_call.1} parent=1 // pred_check_branch
      %23 = sbr.rel (0) target = $region13
    $region12: #{tpu_custom_call.1} parent=1 // pred_region
      %24 = dma.done [#allocation4], 256
    $region13: #{tpu_custom_call.1} parent=1 // pred_fallthru
      _
    %s25 = sld [smem:[#allocation2]]
    %v26 = vld [vmem:[#allocation3] sm:$0xff]
    %v27 = vld [vmem:[#allocation3 + $0x8] sm:$0xff]
    %v28 = vstv %s25
    %v29 = vsub.f32 %v26, %v28
    %v30 = vsub.f32 %v27, %v28
    %v31 = vsub.f32 0.0, %v29
    %v32 = vsub.f32 0.0, %v30
    %v33 = vmul.f32 %v31, 1.442695
    %v34 = vpow.pop %v33
    %v35 = vmul.f32 %v32, 1.442695
    %v36 = vpow.pop %v35
    %v37 = vadd.f32 %v34, 1.0
    %v38 = vadd.f32 %v36, 1.0
    %v39 = vrcp.pop %v37
    %v40 = vmul.f32 1.0, %v39
    %v41 = vrcp.pop %v38
    %v42 = vmul.f32 1.0, %v41
    %43 = vst [vmem:[#allocation6] sm:$0xff] %v40
    %44 = vst [vmem:[#allocation6 + $0x8] sm:$0xff] %v42
    // Predicated region
    $region14: #{tpu_custom_call.1} parent=1 // pred_check
      _
    $region15: #{tpu_custom_call.1} parent=1 // pred_check_branch
      %46 = sbr.rel (0) target = $region17
    $region16: #{tpu_custom_call.1} parent=1 // pred_region
      %s48 = ssub.s32 256, 256
      %49 = vsyncadd [#allocation5], %s48
      %s51 = sshll.u32 [#allocation6], 4
      %s52 = int_to_ptr.vmem [resolvable:$true] %s51
      %54 = dma.vmem_to_hbm [thread:$0]  %s52, 256, %s2, [#allocation5]
    $region17: #{tpu_custom_call.1} parent=1 // pred_fallthru
      _
    // Predicated region
    $region18: #{tpu_custom_call.1} parent=1 // pred_check
      _
    $region19: #{tpu_custom_call.1} parent=1 // pred_check_branch
      %56 = sbr.rel (0) target = $region21
    $region20: #{tpu_custom_call.1} parent=1 // pred_region
      %57 = dma.done [#allocation5], 256
    $region21: #{tpu_custom_call.1} parent=1 // pred_fallthru
      _
    %58 = vsyncpa [#allocation4], 1
    %59 = vsyncpa [#allocation5], 1

</llo_original>
